<compile_context>
chip_gen: v5e
topology: v5e:2x2
jax: 0.10.0
libtpu: 0.0.40
codegen_flags: <defaults>
</compile_context>

<pallas_src>
import functools

import jax
import jax.numpy as jnp
from jax.experimental import pallas as pl
from jax.experimental.pallas import tpu as pltpu


def actor_kernel(x_ref, w1_ref, b1_ref, w2_ref, b2_ref,
                 w3_ref, b3_ref, w4t_ref, b4_ref, o_ref):
    x = x_ref[...]                               # (TB, in_dim) f32
    in_dim = x.shape[1]
    out_dim = w4t_ref.shape[0]

    # ---- fc1 ------------------------------------------------------------
    # K = input_dim is tiny (3 for pendulum): an MXU pass would waste the
    # systolic depth and add a serial push/drain, so use VPU broadcast-FMAs.
    if in_dim <= 16:
        w1 = w1_ref[...]                         # (in_dim, H) f32
        h = b1_ref[...] + x[:, 0:1] * w1[0:1, :]
        for k in range(1, in_dim):               # unrolled at trace time
            h = h + x[:, k:k + 1] * w1[k:k + 1, :]
    else:
        h = jnp.dot(x.astype(jnp.bfloat16),
                    w1_ref[...].astype(jnp.bfloat16),
                    preferred_element_type=jnp.float32) + b1_ref[...]
    h = jnp.maximum(h, 0.0)

    # ---- fc2 / fc3 : MXU, bf16 operands, f32 accumulation ----------------
    h = jnp.dot(h.astype(jnp.bfloat16), w2_ref[...],
                preferred_element_type=jnp.float32)
    h = jnp.maximum(h + b2_ref[...], 0.0)

    h = jnp.dot(h.astype(jnp.bfloat16), w3_ref[...],
                preferred_element_type=jnp.float32)
    h = jnp.maximum(h + b3_ref[...], 0.0)

    # ---- fc4 --------------------------------------------------------------
    # N = output_dim is tiny (1 for pendulum): VPU mul + XLU lane reduction
    # avoids an N=1 MXU matmul + drain on the critical path.
    if out_dim <= 8:
        w4t = w4t_ref[...]                       # (out_dim, H) f32
        cols = [jnp.sum(h * w4t[j:j + 1, :], axis=-1, keepdims=True)
                for j in range(out_dim)]
        y = cols[0] if out_dim == 1 else jnp.concatenate(cols, axis=-1)
    else:
        y = jnp.dot(h.astype(jnp.bfloat16),
                    w4t_ref[...].T.astype(jnp.bfloat16),
                    preferred_element_type=jnp.float32)
    o_ref[...] = jnp.tanh(y + b4_ref[...])


@functools.partial(jax.jit, static_argnames=("tb",))
def actor_forward(x, params, tb=512):
    """x: [B, input_dim] float32; params: dict of f32 weights/biases."""
    B, in_dim = x.shape
    H = params["w2"].shape[0]
    out_dim = params["w4"].shape[1]

    # Batch tile: big enough to amortize per-step overhead and fill MXU rows
    # for large B; for small B just take the whole batch in one block.
    tb = min(tb, B)
    Bp = ((B + tb - 1) // tb) * tb
    x_p = jnp.pad(x, ((0, Bp - B), (0, 0))) if Bp != B else x
    n_tiles = Bp // tb

    # bf16 weights only for the MXU layers (halves their DMA bytes); the
    # VPU-side layers (fc1, fc4) and all biases stay f32.
    w1 = params["w1"]
    w2 = params["w2"].astype(jnp.bfloat16)
    w3 = params["w3"].astype(jnp.bfloat16)
    w4t = params["w4"].T                          # (out_dim, H), lane-major rows
    b1, b2, b3, b4 = params["b1"], params["b2"], params["b3"], params["b4"]

    args = (x_p, w1, b1, w2, b2, w3, b3, w4t, b4)

    def resident(a):
        # Full-array block, constant index_map -> stays in VMEM across steps.
        return pl.BlockSpec(a.shape, lambda i: (0, 0))

    in_specs = [
        pl.BlockSpec((tb, in_dim), lambda i: (i, 0)),   # x: tiled over batch
        resident(w1), resident(b1),
        resident(w2), resident(b2),
        resident(w3), resident(b3),
        resident(w4t), resident(b4),
    ]
    out_spec = pl.BlockSpec((tb, out_dim), lambda i: (i, 0))

    flops = 2 * Bp * (in_dim * H + 2 * H * H + H * out_dim)
    bytes_accessed = (x_p.size * 4 + Bp * out_dim * 4
                      + w1.size * 4 + w2.size * 2 + w3.size * 2 + w4t.size * 4
                      + (b1.size + b2.size + b3.size + b4.size) * 4)

    out = pl.pallas_call(
        actor_kernel,
        out_shape=jax.ShapeDtypeStruct((Bp, out_dim), jnp.float32),
        grid=(n_tiles,),
        in_specs=in_specs,
        out_specs=out_spec,
        compiler_params=pltpu.CompilerParams(
            dimension_semantics=("parallel",)),
        cost_estimate=pl.CostEstimate(
            flops=flops,
            transcendentals=Bp * out_dim,
            bytes_accessed=bytes_accessed),
    )(*args)
    return out[:B]


def init_actor_params(key, input_dim, output_dim, hidden=128):
    """Deterministic synthetic init (PyTorch-Linear-style uniform bounds)."""
    def linear(k, fan_in, fan_out):
        kw, kb = jax.random.split(k)
        bound = 1.0 / jnp.sqrt(float(fan_in))
        w = jax.random.uniform(kw, (fan_in, fan_out), jnp.float32, -bound, bound)
        b = jax.random.uniform(kb, (1, fan_out), jnp.float32, -bound, bound)
        return w, b

    k1, k2, k3, k4 = jax.random.split(key, 4)
    w1, b1 = linear(k1, input_dim, hidden)
    w2, b2 = linear(k2, hidden, hidden)
    w3, b3 = linear(k3, hidden, hidden)
    w4, b4 = linear(k4, hidden, output_dim)
    return {"w1": w1, "b1": b1, "w2": w2, "b2": b2,
            "w3": w3, "b3": b3, "w4": w4, "b4": b4}


def actor_ref(x, p):
    h = jnp.maximum(x @ p["w1"] + p["b1"], 0.0)
    h = jnp.maximum(h @ p["w2"] + p["b2"], 0.0)
    h = jnp.maximum(h @ p["w3"] + p["b3"], 0.0)
    return jnp.tanh(h @ p["w4"] + p["b4"])


if __name__ == "__main__":
    # Pendulum-v0: observation dim = 3, action dim = 1.
    input_dim, output_dim, batch = 3, 1, 8

    key = jax.random.PRNGKey(0)
    kx, kp = jax.random.split(key)
    x = jax.random.normal(kx, (batch, input_dim), jnp.float32)
    params = init_actor_params(kp, input_dim, output_dim)

    out = jax.block_until_ready(actor_forward(x, params))

    ref = actor_ref(x, params)
    assert out.shape == (batch, output_dim)
    # fc2/fc3 use bf16 MXU operands (f32 accumulation) -> loose-ish tolerance
    # vs. the pure-f32 reference.
    assert jnp.allclose(out, ref, atol=2e-2, rtol=2e-2), \
        f"max abs err = {float(jnp.max(jnp.abs(out - ref)))}"

    print("KERNEL_OK")
</pallas_src>

<mosaic_0001>
module attributes {stable_mosaic.version = 11 : i64} {
  func.func @actor_kernel(%arg0: i32, %arg1: memref<8x3xf32, #tpu.memory_space<vmem>>, %arg2: memref<3x128xf32, #tpu.memory_space<vmem>>, %arg3: memref<1x128xf32, #tpu.memory_space<vmem>>, %arg4: memref<128x128xbf16, #tpu.memory_space<vmem>>, %arg5: memref<1x128xf32, #tpu.memory_space<vmem>>, %arg6: memref<128x128xbf16, #tpu.memory_space<vmem>>, %arg7: memref<1x128xf32, #tpu.memory_space<vmem>>, %arg8: memref<1x128xf32, #tpu.memory_space<vmem>>, %arg9: memref<1x1xf32, #tpu.memory_space<vmem>>, %arg10: memref<8x1xf32, #tpu.memory_space<vmem>>) attributes {dimension_semantics = [#tpu.dimension_semantics<parallel>], iteration_bounds = array<i64: 1>, scalar_prefetch = 0 : i64, scratch_operands = 0 : i64, tpu.core_type = #tpu.core_type<tc>, window_params = [{transform_indices = @transform_0, window_bounds = array<i64: 8, 3>}, {pipeline_mode = #tpu.pipeline_mode<synchronous>, transform_indices = @transform_1, window_bounds = array<i64: 3, 128>}, {pipeline_mode = #tpu.pipeline_mode<synchronous>, transform_indices = @transform_2, window_bounds = array<i64: 1, 128>}, {pipeline_mode = #tpu.pipeline_mode<synchronous>, transform_indices = @transform_3, window_bounds = array<i64: 128, 128>}, {pipeline_mode = #tpu.pipeline_mode<synchronous>, transform_indices = @transform_4, window_bounds = array<i64: 1, 128>}, {pipeline_mode = #tpu.pipeline_mode<synchronous>, transform_indices = @transform_5, window_bounds = array<i64: 128, 128>}, {pipeline_mode = #tpu.pipeline_mode<synchronous>, transform_indices = @transform_6, window_bounds = array<i64: 1, 128>}, {pipeline_mode = #tpu.pipeline_mode<synchronous>, transform_indices = @transform_7, window_bounds = array<i64: 1, 128>}, {pipeline_mode = #tpu.pipeline_mode<synchronous>, transform_indices = @transform_8, window_bounds = array<i64: 1, 1>}, {transform_indices = @transform_9, window_bounds = array<i64: 8, 1>}]} {
    %c0 = arith.constant 0 : index
    %c0_0 = arith.constant 0 : index
    %0 = vector.load %arg1[%c0, %c0_0] : memref<8x3xf32, #tpu.memory_space<vmem>>, vector<8x3xf32>
    %c0_1 = arith.constant 0 : index
    %c0_2 = arith.constant 0 : index
    %1 = vector.load %arg2[%c0_1, %c0_2] : memref<3x128xf32, #tpu.memory_space<vmem>>, vector<3x128xf32>
    %c0_3 = arith.constant 0 : index
    %c0_4 = arith.constant 0 : index
    %2 = vector.load %arg3[%c0_3, %c0_4] : memref<1x128xf32, #tpu.memory_space<vmem>>, vector<1x128xf32>
    %3 = vector.extract_strided_slice %0 {offsets = [0, 0], sizes = [8, 1], strides = [1, 1]} : vector<8x3xf32> to vector<8x1xf32>
    %4 = vector.extract_strided_slice %1 {offsets = [0, 0], sizes = [1, 128], strides = [1, 1]} : vector<3x128xf32> to vector<1x128xf32>
    %5 = vector.broadcast %3 : vector<8x1xf32> to vector<8x128xf32>
    %6 = vector.broadcast %4 : vector<1x128xf32> to vector<8x128xf32>
    %7 = arith.mulf %5, %6 : vector<8x128xf32>
    %8 = vector.broadcast %2 : vector<1x128xf32> to vector<8x128xf32>
    %9 = arith.addf %8, %7 : vector<8x128xf32>
    %10 = vector.extract_strided_slice %0 {offsets = [0, 1], sizes = [8, 1], strides = [1, 1]} : vector<8x3xf32> to vector<8x1xf32>
    %11 = vector.extract_strided_slice %1 {offsets = [1, 0], sizes = [1, 128], strides = [1, 1]} : vector<3x128xf32> to vector<1x128xf32>
    %12 = vector.broadcast %10 : vector<8x1xf32> to vector<8x128xf32>
    %13 = vector.broadcast %11 : vector<1x128xf32> to vector<8x128xf32>
    %14 = arith.mulf %12, %13 : vector<8x128xf32>
    %15 = arith.addf %9, %14 : vector<8x128xf32>
    %16 = vector.extract_strided_slice %0 {offsets = [0, 2], sizes = [8, 1], strides = [1, 1]} : vector<8x3xf32> to vector<8x1xf32>
    %17 = vector.extract_strided_slice %1 {offsets = [2, 0], sizes = [1, 128], strides = [1, 1]} : vector<3x128xf32> to vector<1x128xf32>
    %18 = vector.broadcast %16 : vector<8x1xf32> to vector<8x128xf32>
    %19 = vector.broadcast %17 : vector<1x128xf32> to vector<8x128xf32>
    %20 = arith.mulf %18, %19 : vector<8x128xf32>
    %21 = arith.addf %15, %20 : vector<8x128xf32>
    %cst = arith.constant 0.000000e+00 : f32
    %22 = vector.broadcast %cst : f32 to vector<8x128xf32>
    %23 = arith.maximumf %21, %22 : vector<8x128xf32>
    %24 = arith.truncf %23 : vector<8x128xf32> to vector<8x128xbf16>
    %c0_5 = arith.constant 0 : index
    %c0_6 = arith.constant 0 : index
    %25 = vector.load %arg4[%c0_5, %c0_6] : memref<128x128xbf16, #tpu.memory_space<vmem>>, vector<128x128xbf16>
    %cst_7 = arith.constant dense<0.000000e+00> : vector<8x128xf32>
    %26 = tpu.matmul %24, %25, %cst_7 {dimension_numbers = #tpu.dot_dimension_numbers<[1], [0], [0], [1], [0, 0, 1, 1], [], []>} : vector<8x128xbf16>, vector<128x128xbf16>, vector<8x128xf32> -> vector<8x128xf32>
    %c0_8 = arith.constant 0 : index
    %c0_9 = arith.constant 0 : index
    %27 = vector.load %arg5[%c0_8, %c0_9] : memref<1x128xf32, #tpu.memory_space<vmem>>, vector<1x128xf32>
    %28 = vector.broadcast %27 : vector<1x128xf32> to vector<8x128xf32>
    %29 = arith.addf %26, %28 : vector<8x128xf32>
    %cst_10 = arith.constant 0.000000e+00 : f32
    %30 = vector.broadcast %cst_10 : f32 to vector<8x128xf32>
    %31 = arith.maximumf %29, %30 : vector<8x128xf32>
    %32 = arith.truncf %31 : vector<8x128xf32> to vector<8x128xbf16>
    %c0_11 = arith.constant 0 : index
    %c0_12 = arith.constant 0 : index
    %33 = vector.load %arg6[%c0_11, %c0_12] : memref<128x128xbf16, #tpu.memory_space<vmem>>, vector<128x128xbf16>
    %cst_13 = arith.constant dense<0.000000e+00> : vector<8x128xf32>
    %34 = tpu.matmul %32, %33, %cst_13 {dimension_numbers = #tpu.dot_dimension_numbers<[1], [0], [0], [1], [0, 0, 1, 1], [], []>} : vector<8x128xbf16>, vector<128x128xbf16>, vector<8x128xf32> -> vector<8x128xf32>
    %c0_14 = arith.constant 0 : index
    %c0_15 = arith.constant 0 : index
    %35 = vector.load %arg7[%c0_14, %c0_15] : memref<1x128xf32, #tpu.memory_space<vmem>>, vector<1x128xf32>
    %36 = vector.broadcast %35 : vector<1x128xf32> to vector<8x128xf32>
    %37 = arith.addf %34, %36 : vector<8x128xf32>
    %cst_16 = arith.constant 0.000000e+00 : f32
    %38 = vector.broadcast %cst_16 : f32 to vector<8x128xf32>
    %39 = arith.maximumf %37, %38 : vector<8x128xf32>
    %c0_17 = arith.constant 0 : index
    %c0_18 = arith.constant 0 : index
    %40 = vector.load %arg8[%c0_17, %c0_18] : memref<1x128xf32, #tpu.memory_space<vmem>>, vector<1x128xf32>
    %41 = vector.broadcast %40 : vector<1x128xf32> to vector<8x128xf32>
    %42 = arith.mulf %39, %41 : vector<8x128xf32>
    %cst_19 = arith.constant dense<0.000000e+00> : vector<8xf32>
    %43 = vector.multi_reduction <add>, %42, %cst_19 [1] : vector<8x128xf32> to vector<8xf32>
    %44 = vector.shape_cast %43 : vector<8xf32> to vector<8x1xf32>
    %c0_20 = arith.constant 0 : index
    %c0_21 = arith.constant 0 : index
    %45 = vector.load %arg9[%c0_20, %c0_21] : memref<1x1xf32, #tpu.memory_space<vmem>>, vector<1x1xf32>
    %46 = vector.broadcast %45 : vector<1x1xf32> to vector<8x1xf32>
    %47 = arith.addf %44, %46 : vector<8x1xf32>
    %48 = math.tanh %47 : vector<8x1xf32>
    %c0_22 = arith.constant 0 : index
    %c0_23 = arith.constant 0 : index
    %49 = vector.load %arg10[%c0_22, %c0_23] : memref<8x1xf32, #tpu.memory_space<vmem>>, vector<8x1xf32>
    tpu.vector_store %arg10[%c0_22, %c0_23], %48 {strides = array<i32>} : memref<8x1xf32, #tpu.memory_space<vmem>>, vector<8x1xf32>,
    return
  }
  func.func @transform_0(%arg0: i32) -> (i32, i32) {
    %c0_i32 = arith.constant 0 : i32
    %c0_i32_0 = arith.constant 0 : i32
    return %arg0, %c0_i32 : i32, i32
  }
  func.func @transform_1(%arg0: i32) -> (i32, i32) {
    %c0_i32 = arith.constant 0 : i32
    %c0_i32_0 = arith.constant 0 : i32
    %c0_i32_1 = arith.constant 0 : i32
    return %c0_i32, %c0_i32_0 : i32, i32
  }
  func.func @transform_2(%arg0: i32) -> (i32, i32) {
    %c0_i32 = arith.constant 0 : i32
    %c0_i32_0 = arith.constant 0 : i32
    %c0_i32_1 = arith.constant 0 : i32
    return %c0_i32, %c0_i32_0 : i32, i32
  }
  func.func @transform_3(%arg0: i32) -> (i32, i32) {
    %c0_i32 = arith.constant 0 : i32
    %c0_i32_0 = arith.constant 0 : i32
    %c0_i32_1 = arith.constant 0 : i32
    return %c0_i32, %c0_i32_0 : i32, i32
  }
  func.func @transform_4(%arg0: i32) -> (i32, i32) {
    %c0_i32 = arith.constant 0 : i32
    %c0_i32_0 = arith.constant 0 : i32
    %c0_i32_1 = arith.constant 0 : i32
    return %c0_i32, %c0_i32_0 : i32, i32
  }
  func.func @transform_5(%arg0: i32) -> (i32, i32) {
    %c0_i32 = arith.constant 0 : i32
    %c0_i32_0 = arith.constant 0 : i32
    %c0_i32_1 = arith.constant 0 : i32
    return %c0_i32, %c0_i32_0 : i32, i32
  }
  func.func @transform_6(%arg0: i32) -> (i32, i32) {
    %c0_i32 = arith.constant 0 : i32
    %c0_i32_0 = arith.constant 0 : i32
    %c0_i32_1 = arith.constant 0 : i32
    return %c0_i32, %c0_i32_0 : i32, i32
  }
  func.func @transform_7(%arg0: i32) -> (i32, i32) {
    %c0_i32 = arith.constant 0 : i32
    %c0_i32_0 = arith.constant 0 : i32
    %c0_i32_1 = arith.constant 0 : i32
    return %c0_i32, %c0_i32_0 : i32, i32
  }
  func.func @transform_8(%arg0: i32) -> (i32, i32) {
    %c0_i32 = arith.constant 0 : i32
    %c0_i32_0 = arith.constant 0 : i32
    %c0_i32_1 = arith.constant 0 : i32
    return %c0_i32, %c0_i32_0 : i32, i32
  }
  func.func @transform_9(%arg0: i32) -> (i32, i32) {
    %c0_i32 = arith.constant 0 : i32
    %c0_i32_0 = arith.constant 0 : i32
    return %arg0, %c0_i32 : i32, i32
  }
}

</mosaic_0001>

<llo_original>
// kernel: actor_forward.1
$region0: #{actor_forward.1}
  #allocation0 [shape = 'u32[]', space=smem, size = 0x4, offset = 0x4, fixed_abs, tag = 'smem constant byte address 0x4 - core index']
  #allocation1 [shape = 'u32[72,128]{1,0:T(1,128)}', space=vmem, size = 0x9000, scoped, tag = 'internal scratch']
  #allocation2 [shape = 'f32[1,1]{1,0:T(1,128)S(1)}', space=vmem, size = 0x200, scoped, tag = 'scoped memory for actor_forward.1']
  %s0 = inlined_call_operand.vmem [shape: f32[8,3], index: 0, kind: input, shape index: {}]
  %s1 = inlined_call_operand.vmem [shape: f32[3,128], index: 1, kind: input, shape index: {}]
  %s2 = inlined_call_operand.vmem [shape: f32[1,128], index: 2, kind: input, shape index: {}]
  %s3 = inlined_call_operand.vmem [shape: bf16[128,128], index: 3, kind: input, shape index: {}]
  %s4 = inlined_call_operand.vmem [shape: f32[1,128], index: 4, kind: input, shape index: {}]
  %s5 = inlined_call_operand.vmem [shape: bf16[128,128], index: 5, kind: input, shape index: {}]
  %s6 = inlined_call_operand.vmem [shape: f32[1,128], index: 6, kind: input, shape index: {}]
  %s7 = inlined_call_operand.vmem [shape: f32[1,128], index: 7, kind: input, shape index: {}]
  %s8 = inlined_call_operand.<no memory space> [shape: f32[1,1], index: 8, kind: input, shape index: {}]
  %s9 = inlined_call_operand.vmem [shape: f32[8,1], index: 9, kind: output, shape index: {}]
  %s10 = sld [smem:[#allocation0]]
  $region46: #{actor_forward.1} parent=0
    _
  %s12 = ssub.s32 1, %s10
  %s13 = scalar_select 0, %s12, %s10
  %v14 = vstv %s8
  %15 = vst [vmem:[#allocation2] sm:$0x1] %v14
  // Predicated region
  $region2: #{actor_forward.1} parent=0 // pred_check
    _
  $region3: #{actor_forward.1} parent=0 // pred_check_branch
    %17 = sbr.rel (0) target = $region5
  $region4: #{actor_forward.1} parent=0 // pred_region
    _
  $region5: #{actor_forward.1} parent=0 // pred_fallthru
    _
  // Predicated region
  $region6: #{actor_forward.1} parent=0 // pred_check
    _
  $region7: #{actor_forward.1} parent=0 // pred_check_branch
    %19 = sbr.rel (0) target = $region9
  $region8: #{actor_forward.1} parent=0 // pred_region
    _
  $region9: #{actor_forward.1} parent=0 // pred_fallthru
    _
  // Predicated region
  $region10: #{actor_forward.1} parent=0 // pred_check
    _
  $region11: #{actor_forward.1} parent=0 // pred_check_branch
    %21 = sbr.rel (0) target = $region13
  $region12: #{actor_forward.1} parent=0 // pred_region
    _
  $region13: #{actor_forward.1} parent=0 // pred_fallthru
    _
  // Predicated region
  $region14: #{actor_forward.1} parent=0 // pred_check
    _
  $region15: #{actor_forward.1} parent=0 // pred_check_branch
    %23 = sbr.rel (0) target = $region17
  $region16: #{actor_forward.1} parent=0 // pred_region
    _
  $region17: #{actor_forward.1} parent=0 // pred_fallthru
    _
  // Predicated region
  $region18: #{actor_forward.1} parent=0 // pred_check
    _
  $region19: #{actor_forward.1} parent=0 // pred_check_branch
    %25 = sbr.rel (0) target = $region21
  $region20: #{actor_forward.1} parent=0 // pred_region
    _
  $region21: #{actor_forward.1} parent=0 // pred_fallthru
    _
  // Predicated region
  $region22: #{actor_forward.1} parent=0 // pred_check
    _
  $region23: #{actor_forward.1} parent=0 // pred_check_branch
    %27 = sbr.rel (0) target = $region25
  $region24: #{actor_forward.1} parent=0 // pred_region
    _
  $region25: #{actor_forward.1} parent=0 // pred_fallthru
    _
  // Predicated region
  $region26: #{actor_forward.1} parent=0 // pred_check
    _
  $region27: #{actor_forward.1} parent=0 // pred_check_branch
    %29 = sbr.rel (0) target = $region29
  $region28: #{actor_forward.1} parent=0 // pred_region
    _
  $region29: #{actor_forward.1} parent=0 // pred_fallthru
    _
  // Predicated region
  $region30: #{actor_forward.1} parent=0 // pred_check
    _
  $region31: #{actor_forward.1} parent=0 // pred_check_branch
    %31 = sbr.rel (0) target = $region33
  $region32: #{actor_forward.1} parent=0 // pred_region
    _
  $region33: #{actor_forward.1} parent=0 // pred_fallthru
    _
  // Predicated region
  $region34: #{actor_forward.1} parent=0 // pred_check
    _
  $region35: #{actor_forward.1} parent=0 // pred_check_branch
    %33 = sbr.rel (0) target = $region37
  $region36: #{actor_forward.1} parent=0 // pred_region
    _
  $region37: #{actor_forward.1} parent=0 // pred_fallthru
    _
  %v34 = vld [vmem:[%s0] sm:$0xff]
  %v35 = vld [vmem:[%s1] sm:$0x7]
  %v36 = vld [vmem:[%s2] sm:$0x1]
  %38 = vset.pattern.permute.xlu0 0
  %39 = vperm.xlu0 %38, %v34
  %v40 = vpop.permute.xlu0 %39
  %v42 = vperm.slane %v35, 0
  %v43 = vmul.f32 %v40, %v42
  %v45 = vperm.slane %v36, 0
  %v47 = vadd.f32 %v45, %v43
  %48 = vset.pattern.permute.xlu0 1
  %49 = vperm.xlu0 %48, %v34
  %v50 = vpop.permute.xlu0 %49
  %v52 = vperm.slane %v35, 1
  %v53 = vmul.f32 %v50, %v52
  %v54 = vadd.f32 %v47, %v53
  %55 = vset.pattern.permute.xlu0 2
  %56 = vperm.xlu0 %55, %v34
  %v57 = vpop.permute.xlu0 %56
  %v59 = vperm.slane %v35, 2
  %v60 = vmul.f32 %v57, %v59
  %v61 = vadd.f32 %v54, %v60
  %v62 = vmax.f32 %v61, 0.0
  %v63 = vpack.c.bf16 %v62, %v62
  %v64 = vld [vmem:[%s3] sm:$0xf]
  %v65 = vld [vmem:[%s3 + $0x4] sm:$0xf]
  %v66 = vld [vmem:[%s3 + $0x8] sm:$0xf]
  %v67 = vld [vmem:[%s3 + $0xc] sm:$0xf]
  %v68 = vld [vmem:[%s3 + $0x10] sm:$0xf]
  %v69 = vld [vmem:[%s3 + $0x14] sm:$0xf]
  %v70 = vld [vmem:[%s3 + $0x18] sm:$0xf]
  %v71 = vld [vmem:[%s3 + $0x1c] sm:$0xf]
  %v72 = vld [vmem:[%s3 + $0x20] sm:$0xf]
  %v73 = vld [vmem:[%s3 + $0x24] sm:$0xf]
  %v74 = vld [vmem:[%s3 + $0x28] sm:$0xf]
  %v75 = vld [vmem:[%s3 + $0x2c] sm:$0xf]
  %v76 = vld [vmem:[%s3 + $0x30] sm:$0xf]
  %v77 = vld [vmem:[%s3 + $0x34] sm:$0xf]
  %v78 = vld [vmem:[%s3 + $0x38] sm:$0xf]
  %v79 = vld [vmem:[%s3 + $0x3c] sm:$0xf]
  %v80 = vld [vmem:[%s4] sm:$0x1]
  %v82 = vperm.slane %v80, 0
  %v100 = vunpack.c.l.b16 %v64
  %v101 = vunpack.c.l.b16 %v65
  %v102 = vunpack.c.l.b16 %v66
  %v103 = vunpack.c.l.b16 %v67
  %v104 = vunpack.c.l.b16 %v68
  %v105 = vunpack.c.l.b16 %v69
  %v106 = vunpack.c.l.b16 %v70
  %v107 = vunpack.c.l.b16 %v71
  %v108 = vunpack.c.l.b16 %v72
  %v109 = vunpack.c.l.b16 %v73
  %v110 = vunpack.c.l.b16 %v74
  %v111 = vunpack.c.l.b16 %v75
  %v112 = vunpack.c.l.b16 %v76
  %v113 = vunpack.c.l.b16 %v77
  %v114 = vunpack.c.l.b16 %v78
  %v115 = vunpack.c.l.b16 %v79
  %v116 = vpack.c.b16 %v101, %v100
  %v117 = vpack.c.b16 %v103, %v102
  %v118 = vpack.c.b16 %v105, %v104
  %v119 = vpack.c.b16 %v107, %v106
  %v120 = vpack.c.b16 %v109, %v108
  %v121 = vpack.c.b16 %v111, %v110
  %v122 = vpack.c.b16 %v113, %v112
  %v123 = vpack.c.b16 %v115, %v114
  %132 = vmatpush.bf16.msra.mxu0 %v123
  %133 = vmatpush.bf16.msra.mxu0 %v122
  %134 = vmatpush.bf16.msra.mxu0 %v121
  %135 = vmatpush.bf16.msra.mxu0 %v120
  %136 = vmatpush.bf16.msra.mxu0 %v119
  %137 = vmatpush.bf16.msra.mxu0 %v118
  %138 = vmatpush.bf16.msra.mxu0 %v117
  %139 = vmatpush.bf16.msra.mxu0 %v116
  %140 = vmatmul.bf16.gmra.mxu0 %v63
  %v141 = vpop.f32.mrf.mxu0
  %v142 = vadd.f32 %v82, %v141
  %v143 = vpop.f32.mrf.mxu0
  %144 = vdwg.mxu0
  %v145 = vmax.f32 %v142, 0.0
  %v146 = vpack.c.bf16 %v145, %v145
  %v147 = vld [vmem:[%s5] sm:$0xf]
  %v148 = vld [vmem:[%s5 + $0x4] sm:$0xf]
  %v149 = vld [vmem:[%s5 + $0x8] sm:$0xf]
  %v150 = vld [vmem:[%s5 + $0xc] sm:$0xf]
  %v151 = vld [vmem:[%s5 + $0x10] sm:$0xf]
  %v152 = vld [vmem:[%s5 + $0x14] sm:$0xf]
  %v153 = vld [vmem:[%s5 + $0x18] sm:$0xf]
  %v154 = vld [vmem:[%s5 + $0x1c] sm:$0xf]
  %v155 = vld [vmem:[%s5 + $0x20] sm:$0xf]
  %v156 = vld [vmem:[%s5 + $0x24] sm:$0xf]
  %v157 = vld [vmem:[%s5 + $0x28] sm:$0xf]
  %v158 = vld [vmem:[%s5 + $0x2c] sm:$0xf]
  %v159 = vld [vmem:[%s5 + $0x30] sm:$0xf]
  %v160 = vld [vmem:[%s5 + $0x34] sm:$0xf]
  %v161 = vld [vmem:[%s5 + $0x38] sm:$0xf]
  %v162 = vld [vmem:[%s5 + $0x3c] sm:$0xf]
  %v163 = vld [vmem:[%s6] sm:$0x1]
  %v165 = vperm.slane %v163, 0
  %v183 = vunpack.c.l.b16 %v147
  %v184 = vunpack.c.l.b16 %v148
  %v185 = vunpack.c.l.b16 %v149
  %v186 = vunpack.c.l.b16 %v150
  %v187 = vunpack.c.l.b16 %v151
  %v188 = vunpack.c.l.b16 %v152
  %v189 = vunpack.c.l.b16 %v153
  %v190 = vunpack.c.l.b16 %v154
  %v191 = vunpack.c.l.b16 %v155
  %v192 = vunpack.c.l.b16 %v156
  %v193 = vunpack.c.l.b16 %v157
  %v194 = vunpack.c.l.b16 %v158
  %v195 = vunpack.c.l.b16 %v159
  %v196 = vunpack.c.l.b16 %v160
  %v197 = vunpack.c.l.b16 %v161
  %v198 = vunpack.c.l.b16 %v162
  %v199 = vpack.c.b16 %v184, %v183
  %v200 = vpack.c.b16 %v186, %v185
  %v201 = vpack.c.b16 %v188, %v187
  %v202 = vpack.c.b16 %v190, %v189
  %v203 = vpack.c.b16 %v192, %v191
  %v204 = vpack.c.b16 %v194, %v193
  %v205 = vpack.c.b16 %v196, %v195
  %v206 = vpack.c.b16 %v198, %v197
  %215 = vmatpush.bf16.msra.mxu0 %v206
  %216 = vmatpush.bf16.msra.mxu0 %v205
  %217 = vmatpush.bf16.msra.mxu0 %v204
  %218 = vmatpush.bf16.msra.mxu0 %v203
  %219 = vmatpush.bf16.msra.mxu0 %v202
  %220 = vmatpush.bf16.msra.mxu0 %v201
  %221 = vmatpush.bf16.msra.mxu0 %v200
  %222 = vmatpush.bf16.msra.mxu0 %v199
  %223 = vmatmul.bf16.gmra.mxu0 %v146
  %v224 = vpop.f32.mrf.mxu0
  %v225 = vadd.f32 %v165, %v224
  %v226 = vpop.f32.mrf.mxu0
  %227 = vdwg.mxu0
  %v228 = vmax.f32 %v225, 0.0
  %v229 = vld [vmem:[%s7] sm:$0x1]
  %v231 = vperm.slane %v229, 0
  %v233 = vmul.f32 %v228, %v231
  %234 = vadd.xlane.f32.xlu0 %v233
  %v235 = vpop.xlane.xlu0 %234
  %v236 = vld [vmem:[#allocation2] sm:$0x1]
  %v238 = vperm.slane %v236, 0
  %v240 = vadd.f32 %v235, %v238
  %v241 = vtanh.pop %v240
  %vm242 = vcmask 7168
  %243 = vst.msk [vmem:[%s9] sm:$0xff] %vm242, %v241
  // Predicated region
  $region38: #{actor_forward.1} parent=0 // pred_check
    _
  $region39: #{actor_forward.1} parent=0 // pred_check_branch
    %245 = sbr.rel (0) target = $region41
  $region40: #{actor_forward.1} parent=0 // pred_region
    _
  $region41: #{actor_forward.1} parent=0 // pred_fallthru
    _
  // Predicated region
  $region42: #{actor_forward.1} parent=0 // pred_check
    _
  $region43: #{actor_forward.1} parent=0 // pred_check_branch
    %247 = sbr.rel (0) target = $region45
  $region44: #{actor_forward.1} parent=0 // pred_region
    _
  $region45: #{actor_forward.1} parent=0 // pred_fallthru
    _

</llo_original>
